<compile_context>
chip_gen: v5e
topology: v5e:2x2
jax: 0.10.0
libtpu: 0.0.40
codegen_flags: <defaults>
</compile_context>

<pallas_src>
import jax
import jax.numpy as jnp
from jax.experimental import pallas as pl
from jax.experimental.pallas import tpu as pltpu


def _fused_matmul_kernel(w_ref, x_ref, out_ref):
    # w_ref:   (D, K*C)   fused conv∘linear weight (resident; re-DMA skipped)
    # x_ref:   (K*C, tm)  im2col columns for this lane-block of M = B*T
    # out_ref: (D, tm)    lane-dense output block
    out_ref[...] = jnp.dot(
        w_ref[...], x_ref[...], preferred_element_type=jnp.float32
    ).astype(out_ref.dtype)


def location_layer(attention_weights_cat, conv_weight, dense_weight, *,
                   compute_dtype=jnp.bfloat16, block_m=512,
                   min_pallas_rows=1024, use_pallas=None):
    """attention_weights_cat: (B, C=2, T)  [PyTorch NCW layout]
    conv_weight:  (F, C, K)   [PyTorch Conv1d layout]
    dense_weight: (D, F)      [PyTorch Linear layout]
    returns: (B, T, D)
    """
    B, C, T = attention_weights_cat.shape
    F_, Cw, K = conv_weight.shape
    D, Fd = dense_weight.shape
    assert Cw == C and Fd == F_
    # 'same' padding only reproduces PyTorch Conv1d output length T for odd K.
    assert K % 2 == 1, "LocationLayer Pallas kernel requires odd kernel size"
    pad = (K - 1) // 2
    out_dtype = attention_weights_cat.dtype
    KC = K * C
    M = B * T

    # --- wrapper-side layout plumbing (pure data movement, no hoisted compute) ---
    # Transposed im2col with M on the minor (lane) axis:
    #   x_colsT[k*C + c, b*T + t] = x_pad[b, c, t + k]
    x_pad = jnp.pad(attention_weights_cat, ((0, 0), (0, 0), (pad, pad)))   # (B, C, Tp)
    cols = jnp.stack([x_pad[:, :, k:k + T] for k in range(K)], axis=0)     # (K, B, C, T)
    x_colsT = jnp.transpose(cols, (0, 2, 1, 3)).reshape(KC, M)             # (K*C, M), T minor

    # Fused weight, transposed: w_fusedT[d, k*C + c] = sum_f conv[f,c,k] * dense[d,f]
    w_fusedT = jnp.einsum("fck,df->dkc", conv_weight, dense_weight).reshape(D, KC)

    x_colsT = x_colsT.astype(compute_dtype)
    w_fusedT = w_fusedT.astype(compute_dtype)

    if use_pallas is None:
        use_pallas = M >= min_pallas_rows
    if not use_pallas:
        # Tiny problem: XLA fuses this for free; pallas_call overhead would dominate.
        outT = jnp.dot(w_fusedT, x_colsT, preferred_element_type=jnp.float32)
        return outT.astype(out_dtype).T.reshape(B, T, D)

    # Tile M along the lane axis: multiple of 128, capped at block_m.
    tm = min(block_m, pl.cdiv(M, 128) * 128)
    tm = max(128, (tm // 128) * 128)
    M_pad = pl.cdiv(M, tm) * tm
    if M_pad != M:
        x_colsT = jnp.pad(x_colsT, ((0, 0), (0, M_pad - M)))
    grid = (M_pad // tm,)

    outT = pl.pallas_call(
        _fused_matmul_kernel,
        out_shape=jax.ShapeDtypeStruct((D, M_pad), out_dtype),
        grid=grid,
        in_specs=[
            pl.BlockSpec((D, KC), lambda i: (0, 0)),    # weight: same block every step
            pl.BlockSpec((KC, tm), lambda i: (0, i)),   # activations: lane-blocked over M
        ],
        out_specs=pl.BlockSpec((D, tm), lambda i: (0, i)),
        compiler_params=pltpu.CompilerParams(
            dimension_semantics=("parallel",)),          # shards across TCs on v7x too
    )(w_fusedT, x_colsT)

    # Drop the M padding and restore (B, T, D). (Layout plumbing outside the kernel.)
    return outT[:, :M].T.reshape(B, T, D).astype(out_dtype)


def location_layer_ref(attention_weights_cat, conv_weight, dense_weight):
    """Plain-JAX f32 reference with PyTorch-identical semantics."""
    B, C, T = attention_weights_cat.shape
    F_, _, K = conv_weight.shape
    pad = (K - 1) // 2
    x_pad = jnp.pad(attention_weights_cat, ((0, 0), (0, 0), (pad, pad)))  # (B, C, Tp)
    conv_out = jnp.zeros((B, F_, T), jnp.float32)
    for k in range(K):
        conv_out = conv_out + jnp.einsum(
            "bct,fc->bft", x_pad[:, :, k:k + T], conv_weight[:, :, k])
    processed = jnp.transpose(conv_out, (0, 2, 1))                  # (B, T, F)
    return jnp.einsum("btf,df->btd", processed, dense_weight)       # (B, T, D)


if __name__ == "__main__":
    # Small shapes consistent with LocationLayer's forward (M = B*T = 1024
    # exercises a 2-block pipelined grid with tm = 512).
    B, T = 2, 512
    attention_n_filters = 8
    attention_kernel_size = 5
    attention_dim = 16

    key = jax.random.PRNGKey(0)
    k1, k2, k3 = jax.random.split(key, 3)

    # Input: (B, 2, T) attention weights (cumulative + current), NCW as in PyTorch.
    attention_weights_cat = jax.random.normal(k1, (B, 2, T), jnp.float32)

    # Deterministic synthetic params (xavier-like scale; not loaded from a checkpoint).
    conv_weight = jax.random.normal(
        k2, (attention_n_filters, 2, attention_kernel_size), jnp.float32) * 0.2
    dense_weight = jax.random.normal(
        k3, (attention_dim, attention_n_filters), jnp.float32) * 0.2

    ref = location_layer_ref(attention_weights_cat, conv_weight, dense_weight)

    # 1) Exact-precision check of the Pallas kernel (f32 operands, f32 accumulation).
    out_f32 = location_layer(attention_weights_cat, conv_weight, dense_weight,
                             compute_dtype=jnp.float32, use_pallas=True)
    out_f32 = jax.block_until_ready(out_f32)
    assert out_f32.shape == (B, T, attention_dim)
    assert jnp.allclose(out_f32, ref, atol=1e-4, rtol=1e-4), "f32 mismatch vs reference"

    # 2) Default performance path: bf16 operands, f32 MXU accumulation.
    out_bf16 = location_layer(attention_weights_cat, conv_weight, dense_weight,
                              use_pallas=True)
    out_bf16 = jax.block_until_ready(out_bf16)
    assert out_bf16.shape == (B, T, attention_dim)
    assert jnp.allclose(out_bf16.astype(jnp.float32), ref, atol=5e-2, rtol=5e-2), \
        "bf16 path mismatch vs reference"

    print("KERNEL_OK")
</pallas_src>

<mosaic_0001>
module attributes {stable_mosaic.version = 11 : i64} {
  func.func @_fused_matmul_kernel(%arg0: i32, %arg1: memref<16x10xf32, #tpu.memory_space<vmem>>, %arg2: memref<10x512xf32, #tpu.memory_space<vmem>>, %arg3: memref<16x512xf32, #tpu.memory_space<vmem>>) attributes {dimension_semantics = [#tpu.dimension_semantics<parallel>], iteration_bounds = array<i64: 2>, scalar_prefetch = 0 : i64, scratch_operands = 0 : i64, tpu.core_type = #tpu.core_type<tc>, window_params = [{pipeline_mode = #tpu.pipeline_mode<synchronous>, transform_indices = @transform_0, window_bounds = array<i64: 16, 10>}, {transform_indices = @transform_1, window_bounds = array<i64: 10, 512>}, {transform_indices = @transform_2, window_bounds = array<i64: 16, 512>}]} {
    %c0 = arith.constant 0 : index
    %c0_0 = arith.constant 0 : index
    %0 = vector.load %arg1[%c0, %c0_0] : memref<16x10xf32, #tpu.memory_space<vmem>>, vector<16x10xf32>
    %c0_1 = arith.constant 0 : index
    %c0_2 = arith.constant 0 : index
    %1 = vector.load %arg2[%c0_1, %c0_2] : memref<10x512xf32, #tpu.memory_space<vmem>>, vector<10x512xf32>
    %cst = arith.constant dense<0.000000e+00> : vector<16x512xf32>
    %2 = tpu.matmul %0, %1, %cst {dimension_numbers = #tpu.dot_dimension_numbers<[1], [0], [0], [1], [0, 0, 1, 1], [], []>} : vector<16x10xf32>, vector<10x512xf32>, vector<16x512xf32> -> vector<16x512xf32>
    %c0_3 = arith.constant 0 : index
    %c0_4 = arith.constant 0 : index
    %3 = vector.load %arg3[%c0_3, %c0_4] : memref<16x512xf32, #tpu.memory_space<vmem>>, vector<16x512xf32>
    tpu.vector_store %arg3[%c0_3, %c0_4], %2 {strides = array<i32>} : memref<16x512xf32, #tpu.memory_space<vmem>>, vector<16x512xf32>,
    return
  }
  func.func @transform_0(%arg0: i32) -> (i32, i32) {
    %c0_i32 = arith.constant 0 : i32
    %c0_i32_0 = arith.constant 0 : i32
    %c0_i32_1 = arith.constant 0 : i32
    return %c0_i32, %c0_i32_0 : i32, i32
  }
  func.func @transform_1(%arg0: i32) -> (i32, i32) {
    %c0_i32 = arith.constant 0 : i32
    %c0_i32_0 = arith.constant 0 : i32
    return %c0_i32, %arg0 : i32, i32
  }
  func.func @transform_2(%arg0: i32) -> (i32, i32) {
    %c0_i32 = arith.constant 0 : i32
    %c0_i32_0 = arith.constant 0 : i32
    return %c0_i32, %arg0 : i32, i32
  }
}

</mosaic_0001>

<llo_original>
// kernel: tpu_custom_call.1
$region0: #{tpu_custom_call.1}
  #allocation0 [shape = 'u32[]', space=smem, size = 0x4, offset = 0x4, fixed_abs, tag = 'smem constant byte address 0x4 - core index']
  #allocation1 [shape = 'u32[72,128]{1,0:T(1,128)}', space=vmem, size = 0x9000, scoped, tag = 'internal scratch']
  %s0 = inlined_call_operand.hbm [shape: f32[16,10], index: 0, kind: input, shape index: {}]
  %s1 = inlined_call_operand.hbm [shape: f32[10,1024], index: 1, kind: input, shape index: {}]
  %s2 = inlined_call_operand.hbm [shape: f32[16,1024], index: 2, kind: output, shape index: {}]
  %s3 = sld [smem:[#allocation0]]
  $region49: #{tpu_custom_call.1} parent=0
    _
  %s5 = ssub.s32 1, %s3
  %s6 = scalar_select 0, %s5, %s3
  $region1: #{tpu_custom_call.1} parent=0
    #allocation2 [shape = 'u8[8192]{0}', space=vmem, size = 0x2000, scoped, tag = 'input window, operand 0, single buffered']
    #allocation3 [shape = 's32[2]{0}', space=sflag, size = 0x8, scoped, tag = 'scoped memory for tpu_custom_call.1']
    #allocation4 [shape = 's32[2]{0}', space=sflag, size = 0x8, scoped, tag = 'scoped memory for tpu_custom_call.1']
    #allocation5 [shape = 'u8[65536]{0}', space=vmem, size = 0x10000, scoped, tag = 'input window, operand 1']
    #allocation6 [shape = 's32[2]{0}', space=sflag, size = 0x8, scoped, tag = 'scoped memory for tpu_custom_call.1']
    #allocation7 [shape = 'u8[65536]{0}', space=vmem, size = 0x10000, scoped, tag = 'output window, operand 0']
    %7 = vsyncpa [#allocation3], 0
    %8 = vsyncpa [#allocation6], 0
    %s9 = scalar_lea.sflag [#allocation6], 1
    %10 = vsyncpa %s9, 0
    %11 = vsyncpa [#allocation4], 0
    %s12 = scalar_lea.sflag [#allocation4], 1
    %13 = vsyncpa %s12, 0
    loop: start=0, step=1, limit=4
    $region2: #{tpu_custom_call.1} parent=1 // loop_pre_header
      _
    $region3: #{tpu_custom_call.1} parent=1 // loop_header
      %s15 = sphi 0, %s19
      %p16 = scmp.ge.s32.totalorder %s15, 4
      %s23 = sphi 0, %s23
      %s25 = sphi 0, %s23
      %s26 = sphi 0, %s25
      %s40 = sphi 0, %s26
      %s46 = sphi 0, %s48
      %s49 = sphi 0, %s46
      %s50 = sphi 0, %s49
      %s66 = sphi 0, %s50
      %s72 = sphi 0, %s74
      %s75 = sphi 0, %s72
      %s76 = sphi 0, %s75
      %s92 = sphi 0, %s76
    $region4: #{tpu_custom_call.1} parent=1 // loop_header_branch
      %18 = sbr.rel (%p16) target = $region8
    $region5: #{tpu_custom_call.1} parent=1 // loop_body
      %s20 = ssub.s32 %s15, 1
      %s21 = ssub.s32 %s15, 2
      %s22 = sadd.s32 %s15, 1
      %s24 = sadd.s32 %s23, 1
      %p27 = scmp.eq.s32.totalorder %s15, 1
      %p28 = scmp.ne.s32.totalorder %s23, %s25
      %p29 = scmp.eq.s32.totalorder %s15, 0
      %p30 = por %p28, %p29
      %p31 = scmp.ne.s32.totalorder %s23, %s25
      %p32 = scmp.eq.s32.totalorder %s20, 1
      %p33 = por %p31, %p32
      %p34 = scmp.ne.s32.totalorder %s25, %s26
      %p35 = scmp.eq.s32.totalorder %s20, 0
      %p36 = por %p34, %p35
      %p37 = scmp.ne.s32.totalorder %s25, %s26
      %p38 = scmp.eq.s32.totalorder %s21, 1
      %p39 = por %p37, %p38
      %p41 = scmp.ne.s32.totalorder %s26, %s40
      %p42 = scmp.eq.s32.totalorder %s21, 0
      %p43 = por %p41, %p42
      %s44 = ssub.s32 %s15, %s22
      %p45 = scmp.eq.s32.totalorder %s44, 0
      %s47 = sadd.s32 %s46, 1
      %s48 = scalar_select %p45, %s46, %s47
      %p51 = pneg %p45
      %p52 = scmp.eq.s32.totalorder %s15, 1
      %p53 = por %p51, %p52
      %p54 = scmp.ne.s32.totalorder %s46, %s49
      %p55 = scmp.eq.s32.totalorder %s15, 0
      %p56 = por %p54, %p55
      %p57 = scmp.ne.s32.totalorder %s46, %s49
      %p58 = scmp.eq.s32.totalorder %s20, 1
      %p59 = por %p57, %p58
      %p60 = scmp.ne.s32.totalorder %s49, %s50
      %p61 = scmp.eq.s32.totalorder %s20, 0
      %p62 = por %p60, %p61
      %p63 = scmp.ne.s32.totalorder %s49, %s50
      %p64 = scmp.eq.s32.totalorder %s21, 1
      %p65 = por %p63, %p64
      %p67 = scmp.ne.s32.totalorder %s50, %s66
      %p68 = scmp.eq.s32.totalorder %s21, 0
      %p69 = por %p67, %p68
      %s70 = ssub.s32 %s15, %s22
      %p71 = scmp.eq.s32.totalorder %s70, 0
      %s73 = sadd.s32 %s72, 1
      %s74 = scalar_select %p71, %s72, %s73
      %p77 = pneg %p71
      %p78 = scmp.eq.s32.totalorder %s15, 1
      %p79 = por %p77, %p78
      %p80 = scmp.ne.s32.totalorder %s72, %s75
      %p81 = scmp.eq.s32.totalorder %s15, 0
      %p82 = por %p80, %p81
      %p83 = scmp.ne.s32.totalorder %s72, %s75
      %p84 = scmp.eq.s32.totalorder %s20, 1
      %p85 = por %p83, %p84
      %p86 = scmp.ne.s32.totalorder %s75, %s76
      %p87 = scmp.eq.s32.totalorder %s20, 0
      %p88 = por %p86, %p87
      %p89 = scmp.ne.s32.totalorder %s75, %s76
      %p90 = scmp.eq.s32.totalorder %s21, 1
      %p91 = por %p89, %p90
      %p93 = scmp.ne.s32.totalorder %s76, %s92
      %p94 = scmp.eq.s32.totalorder %s21, 0
      %p95 = por %p93, %p94
      %p96 = scmp.le.s32.totalorder 1, %s15
      %p97 = scmp.lt.s32.totalorder %s15, 3
      %p98 = pnand %p96, %p97
      %p99 = pneg %p98
      // Predicated region
      $region9: #{tpu_custom_call.1} parent=5 // pred_check
        _
      $region10: #{tpu_custom_call.1} parent=5 // pred_check_branch
        %101 = sbr.rel (%p98) target = $region12
      $region11: #{tpu_custom_call.1} parent=5 // pred_region
        %s102 = ssub.s32 %s15, 1
        // Predicated region
        $region13: #{tpu_custom_call.1} parent=11 // pred_check
          %p103 = pneg %p36
        $region14: #{tpu_custom_call.1} parent=11 // pred_check_branch
          %105 = sbr.rel (%p103) target = $region16
        $region15: #{tpu_custom_call.1} parent=11 // pred_region
          %107 = vsyncadd [#allocation3], 0
          %s108 = sshll.u32 %s0, 4
          %s109 = int_to_ptr.hbm [resolvable:$true] %s108
          %s110 = sshll.u32 [#allocation2], 4
          %s111 = int_to_ptr.vmem [resolvable:$true] %s110
          %116 = dma.hbm_to_vmem [thread:$0]  %s109, 256, %s111, [#allocation3], 128, 128, 8
        $region16: #{tpu_custom_call.1} parent=11 // pred_fallthru
          _
      $region12: #{tpu_custom_call.1} parent=5 // pred_fallthru
        _
      %p117 = scmp.lt.s32.totalorder %s15, 2
      // Predicated region
      $region17: #{tpu_custom_call.1} parent=5 // pred_check
        %p118 = pneg %p117
      $region18: #{tpu_custom_call.1} parent=5 // pred_check_branch
        %120 = sbr.rel (%p118) target = $region20
      $region19: #{tpu_custom_call.1} parent=5 // pred_region
        // Predicated region
        $region21: #{tpu_custom_call.1} parent=19 // pred_check
          %p121 = pneg %p56
        $region22: #{tpu_custom_call.1} parent=19 // pred_check_branch
          %123 = sbr.rel (%p121) target = $region24
        $region23: #{tpu_custom_call.1} parent=19 // pred_region
          %s124 = sand.u32 %s46, 1
          %s125 = scalar_lea.sflag [#allocation6], %s124
          %s126 = sand.u32 %s46, 1
          %s127 = smul.addr %s126, 64
          %s128 = scalar_lea.vmem [#allocation5], %s127
          %s129 = smul.u32 4, %s15
          %131 = vsyncadd %s125, 0
          %s132 = smul.addr %s129, 8
          %s133 = scalar_lea.hbm %s1, %s132
          %s134 = sshll.u32 %s133, 4
          %s135 = int_to_ptr.hbm [resolvable:$true] %s134
          %s136 = sshll.u32 %s128, 4
          %s137 = int_to_ptr.vmem [resolvable:$true] %s136
          %142 = dma.hbm_to_vmem [thread:$0]  %s135, 1024, %s137, %s125, 1024, 512, 32
        $region24: #{tpu_custom_call.1} parent=19 // pred_fallthru
          _
      $region20: #{tpu_custom_call.1} parent=5 // pred_fallthru
        _
      %p143 = scmp.le.s32.totalorder 1, %s15
      %p144 = scmp.lt.s32.totalorder %s15, 3
      %p145 = pnand %p143, %p144
      %p146 = pneg %p145
      // Predicated region
      $region25: #{tpu_custom_call.1} parent=5 // pred_check
        _
      $region26: #{tpu_custom_call.1} parent=5 // pred_check_branch
        %148 = sbr.rel (%p145) target = $region28
      $region27: #{tpu_custom_call.1} parent=5 // pred_region
        %s149 = ssub.s32 %s15, 1
        // Predicated region
        $region29: #{tpu_custom_call.1} parent=27 // pred_check
          %p150 = pneg %p36
        $region30: #{tpu_custom_call.1} parent=27 // pred_check_branch
          %152 = sbr.rel (%p150) target = $region32
        $region31: #{tpu_custom_call.1} parent=27 // pred_region
          %154 = dma.done [#allocation3], 256
        $region32: #{tpu_custom_call.1} parent=27 // pred_fallthru
          _
        %s155 = sand.u32 %s49, 1
        %s156 = scalar_lea.sflag [#allocation6], %s155
        %s157 = sand.u32 %s49, 1
        %s158 = smul.addr %s157, 64
        %s159 = scalar_lea.vmem [#allocation5], %s158
        // Predicated region
        $region33: #{tpu_custom_call.1} parent=27 // pred_check
          %p160 = pneg %p62
        $region34: #{tpu_custom_call.1} parent=27 // pred_check_branch
          %162 = sbr.rel (%p160) target = $region36
        $region35: #{tpu_custom_call.1} parent=27 // pred_region
          %164 = dma.done %s156, 1024
        $region36: #{tpu_custom_call.1} parent=27 // pred_fallthru
          _
        %p165 = pneg %p36
        %p166 = pneg %p33
        %s167 = sand.u32 %s49, 1
        %s168 = scalar_lea.sflag [#allocation6], %s167
        %s169 = sand.u32 %s49, 1
        %s170 = smul.addr %s169, 64
        %s171 = scalar_lea.vmem [#allocation5], %s170
        %p172 = pneg %p62
        %p173 = pneg %p59
        %p174 = pneg %p88
        %p175 = pneg %p85
        %s176 = sand.u32 %s75, 1
        %s177 = scalar_lea.sflag [#allocation4], %s176
        %s178 = sand.u32 %s75, 1
        %s179 = smul.addr %s178, 64
        %s180 = scalar_lea.vmem [#allocation7], %s179
        %s181 = smul.u32 4, %s20
        %s182 = smul.u32 4, %s20
        %v183 = vld [vmem:[#allocation2] sm:$0xff]
        %v184 = vld [vmem:[#allocation2 + $0x8] sm:$0xff]
        %v185 = vld [vmem:[%s159] sm:$0xff]
        %v186 = vld [vmem:[%s159 + $0x8] sm:$0xff]
        %v187 = vld [vmem:[%s159 + $0x10] sm:$0xff]
        %v188 = vld [vmem:[%s159 + $0x18] sm:$0xff]
        %v189 = vld [vmem:[%s159 + $0x20] sm:$0x3]
        %v190 = vld [vmem:[%s159 + $0x28] sm:$0x3]
        %v191 = vld [vmem:[%s159 + $0x30] sm:$0x3]
        %v192 = vld [vmem:[%s159 + $0x38] sm:$0x3]
        %vm193 = vcmask 80896
        %v195 = vsel %vm193, %v183, 0
        %v198 = vsel %vm193, %v184, 0
        %vm200 = vcmask 1041408
        %v202 = vsel %vm200, %v189, 0
        %v205 = vsel %vm200, %v190, 0
        %v208 = vsel %vm200, %v191, 0
        %v211 = vsel %vm200, %v192, 0
        %213 = vmatpush.msra.mxu0 0.0
        %214 = vmatpush.msra.mxu0 0.0
        %215 = vmatpush.msra.mxu0 0.0
        %216 = vmatpush.msra.mxu0 0.0
        %217 = vmatpush.msra.mxu0 0.0
        %218 = vmatpush.msra.mxu0 0.0
        %219 = vmatpush.msra.mxu0 0.0
        %220 = vmatpush.msra.mxu0 0.0
        %221 = vmatpush.msra.mxu0 0.0
        %222 = vmatpush.msra.mxu0 0.0
        %223 = vmatpush.msra.mxu0 0.0
        %224 = vmatpush.msra.mxu0 0.0
        %225 = vmatpush.msra.mxu0 0.0
        %226 = vmatpush.msra.mxu0 0.0
        %227 = vmatpush.msra.mxu0 %v202
        %228 = vmatpush.msra.mxu0 %v185
        %229 = vmatmul.f32.gmra.mxu0 %v195
        %v230 = vpop.f32.mrf.mxu0
        %v231 = vadd.f32 0.0, %v230
        %232 = vmatmul.f32.gmra.mxu0 %v198
        %v233 = vpop.f32.mrf.mxu0
        %v234 = vadd.f32 0.0, %v233
        %235 = vdwg.mxu0
        %236 = vmatpush.msra.mxu0 0.0
        %237 = vmatpush.msra.mxu0 0.0
        %238 = vmatpush.msra.mxu0 0.0
        %239 = vmatpush.msra.mxu0 0.0
        %240 = vmatpush.msra.mxu0 0.0
        %241 = vmatpush.msra.mxu0 0.0
        %242 = vmatpush.msra.mxu0 0.0
        %243 = vmatpush.msra.mxu0 0.0
        %244 = vmatpush.msra.mxu0 0.0
        %245 = vmatpush.msra.mxu0 0.0
        %246 = vmatpush.msra.mxu0 0.0
        %247 = vmatpush.msra.mxu0 0.0
        %248 = vmatpush.msra.mxu0 0.0
        %249 = vmatpush.msra.mxu0 0.0
        %250 = vmatpush.msra.mxu0 %v205
        %251 = vmatpush.msra.mxu0 %v186
        %252 = vmatmul.f32.gmra.mxu0 %v195
        %v253 = vpop.f32.mrf.mxu0
        %v254 = vadd.f32 0.0, %v253
        %255 = vmatmul.f32.gmra.mxu0 %v198
        %v256 = vpop.f32.mrf.mxu0
        %v257 = vadd.f32 0.0, %v256
        %258 = vdwg.mxu0
        %259 = vmatpush.msra.mxu0 0.0
        %260 = vmatpush.msra.mxu0 0.0
        %261 = vmatpush.msra.mxu0 0.0
        %262 = vmatpush.msra.mxu0 0.0
        %263 = vmatpush.msra.mxu0 0.0
        %264 = vmatpush.msra.mxu0 0.0
        %265 = vmatpush.msra.mxu0 0.0
        %266 = vmatpush.msra.mxu0 0.0
        %267 = vmatpush.msra.mxu0 0.0
        %268 = vmatpush.msra.mxu0 0.0
        %269 = vmatpush.msra.mxu0 0.0
        %270 = vmatpush.msra.mxu0 0.0
        %271 = vmatpush.msra.mxu0 0.0
        %272 = vmatpush.msra.mxu0 0.0
        %273 = vmatpush.msra.mxu0 %v208
        %274 = vmatpush.msra.mxu0 %v187
        %275 = vmatmul.f32.gmra.mxu0 %v195
        %v276 = vpop.f32.mrf.mxu0
        %v277 = vadd.f32 0.0, %v276
        %278 = vmatmul.f32.gmra.mxu0 %v198
        %v279 = vpop.f32.mrf.mxu0
        %v280 = vadd.f32 0.0, %v279
        %281 = vdwg.mxu0
        %282 = vmatpush.msra.mxu0 0.0
        %283 = vmatpush.msra.mxu0 0.0
        %284 = vmatpush.msra.mxu0 0.0
        %285 = vmatpush.msra.mxu0 0.0
        %286 = vmatpush.msra.mxu0 0.0
        %287 = vmatpush.msra.mxu0 0.0
        %288 = vmatpush.msra.mxu0 0.0
        %289 = vmatpush.msra.mxu0 0.0
        %290 = vmatpush.msra.mxu0 0.0
        %291 = vmatpush.msra.mxu0 0.0
        %292 = vmatpush.msra.mxu0 0.0
        %293 = vmatpush.msra.mxu0 0.0
        %294 = vmatpush.msra.mxu0 0.0
        %295 = vmatpush.msra.mxu0 0.0
        %296 = vmatpush.msra.mxu0 %v211
        %297 = vmatpush.msra.mxu0 %v188
        %298 = vmatmul.f32.gmra.mxu0 %v195
        %v299 = vpop.f32.mrf.mxu0
        %v300 = vadd.f32 0.0, %v299
        %301 = vmatmul.f32.gmra.mxu0 %v198
        %v302 = vpop.f32.mrf.mxu0
        %v303 = vadd.f32 0.0, %v302
        %304 = vdwg.mxu0
        %305 = vst [vmem:[%s180] sm:$0xff] %v231
        %306 = vst [vmem:[%s180 + $0x8] sm:$0xff] %v254
        %307 = vst [vmem:[%s180 + $0x10] sm:$0xff] %v277
        %308 = vst [vmem:[%s180 + $0x18] sm:$0xff] %v300
        %309 = vst [vmem:[%s180 + $0x20] sm:$0xff] %v234
        %310 = vst [vmem:[%s180 + $0x28] sm:$0xff] %v257
        %311 = vst [vmem:[%s180 + $0x30] sm:$0xff] %v280
        %312 = vst [vmem:[%s180 + $0x38] sm:$0xff] %v303
        %s313 = sand.u32 %s75, 1
        %s314 = scalar_lea.sflag [#allocation4], %s313
        %s315 = sand.u32 %s75, 1
        %s316 = smul.addr %s315, 64
        %s317 = scalar_lea.vmem [#allocation7], %s316
        // Predicated region
        $region37: #{tpu_custom_call.1} parent=27 // pred_check
          %p318 = pneg %p85
        $region38: #{tpu_custom_call.1} parent=27 // pred_check_branch
          %320 = sbr.rel (%p318) target = $region40
        $region39: #{tpu_custom_call.1} parent=27 // pred_region
          %s321 = smul.u32 4, %s20
          %323 = vsyncadd %s314, 0
          %s324 = smul.addr %s321, 8
          %s325 = scalar_lea.hbm %s2, %s324
          %s326 = sshll.u32 %s317, 4
          %s327 = int_to_ptr.vmem [resolvable:$true] %s326
          %s328 = sshll.u32 %s325, 4
          %s329 = int_to_ptr.hbm [resolvable:$true] %s328
          %334 = dma.vmem_to_hbm [thread:$0]  %s327, 1024, %s329, %s314, 512, 1024, 32
        $region40: #{tpu_custom_call.1} parent=27 // pred_fallthru
          _
      $region28: #{tpu_custom_call.1} parent=5 // pred_fallthru
        _
      %p335 = scmp.le.s32.totalorder 2, %s15
      // Predicated region
      $region41: #{tpu_custom_call.1} parent=5 // pred_check
        %p336 = pneg %p335
      $region42: #{tpu_custom_call.1} parent=5 // pred_check_branch
        %338 = sbr.rel (%p336) target = $region44
      $region43: #{tpu_custom_call.1} parent=5 // pred_region
        %s339 = ssub.s32 %s15, 2
        // Predicated region
        $region45: #{tpu_custom_call.1} parent=43 // pred_check
          %p340 = pneg %p91
        $region46: #{tpu_custom_call.1} parent=43 // pred_check_branch
          %342 = sbr.rel (%p340) target = $region48
        $region47: #{tpu_custom_call.1} parent=43 // pred_region
          %s343 = sand.u32 %s76, 1
          %s344 = scalar_lea.sflag [#allocation4], %s343
          %s345 = sand.u32 %s76, 1
          %s346 = smul.addr %s345, 64
          %s347 = scalar_lea.vmem [#allocation7], %s346
          %349 = dma.done %s344, 1024
        $region48: #{tpu_custom_call.1} parent=43 // pred_fallthru
          _
      $region44: #{tpu_custom_call.1} parent=5 // pred_fallthru
        _
    $region6: #{tpu_custom_call.1} parent=1 // loop_footer
      %s19 = sadd.s32 1, %s15
    $region7: #{tpu_custom_call.1} parent=1 // loop_footer_branch
      %14 = sbr.rel target = $region3
    $region8: #{tpu_custom_call.1} parent=1 // loop_exit
      _
    %350 = vsyncpa [#allocation3], 1
    %s351 = scalar_lea.sflag [#allocation3], 1
    %352 = vsyncpa %s351, 1
    %353 = vsyncpa [#allocation6], 1
    %s354 = scalar_lea.sflag [#allocation6], 1
    %355 = vsyncpa %s354, 1
    %356 = vsyncpa [#allocation4], 1
    %s357 = scalar_lea.sflag [#allocation4], 1
    %358 = vsyncpa %s357, 1

</llo_original>
